<compile_context>
chip_gen: v7x
topology: tpu7x:2x2x1
jax: 0.10.0
libtpu: 0.0.40
codegen_flags: <defaults>
</compile_context>

<pallas_src>
import math

import jax
import jax.numpy as jnp
from jax.experimental import pallas as pl
from jax.experimental.pallas import tpu as pltpu


def _avgpool_kernel(x_ref, o_ref):
    # x_ref block: (k*k, row_blk, lane_blk) unfolded window slabs
    # o_ref block: (row_blk, lane_blk)
    kk = x_ref.shape[0]
    acc = x_ref[0]
    for p in range(1, kk):          # chained adds keep loads streaming per slab
        acc = acc + x_ref[p]
    o_ref[...] = (acc * (1.0 / kk)).astype(o_ref.dtype)   # static scale, no divide


def _largest_aligned_divisor(dim, align, cap):
    """Largest multiple of `align` that divides `dim` and is <= `cap` (0 if none)."""
    blk = (cap // align) * align
    while blk >= align:
        if dim % blk == 0:
            return blk
        blk -= align
    return 0


def _choose_tiling(m, kk, dsize):
    """Pick (m_pad, lane_blk, rows, row_blk) for the flat (k*k, m) problem."""
    LANE_CAP = 2048                    # lane block: multiple of 128
    ROW_CAP = 256                      # sublane block: multiple of 8
    TILE_BUDGET = 36 * 1024 * 1024     # double-buffered in+out tiles (v7x-safe)

    lane = _largest_aligned_divisor(m, 128, LANE_CAP)
    m_pad = m
    if lane == 0:
        # No 128-aligned divisor: pad the flat dim instead of falling back to a
        # huge unaligned full-extent block (unmasked stores, bounded VMEM).
        m_pad = -(-m // 128) * 128
        lane = _largest_aligned_divisor(m_pad, 128, LANE_CAP)
    rows = m_pad // lane

    per_row_bytes = 2 * dsize * (kk + 1) * lane   # dbl-buffered input slabs + output
    row_cap = min(ROW_CAP, max(8, (TILE_BUDGET // per_row_bytes) // 8 * 8))

    # Prefer >= 2 grid steps so both TensorCores on v7x get work.
    row = _largest_aligned_divisor(rows, 8, min(row_cap, max(8, rows // 2)))
    if row == 0:
        row = _largest_aligned_divisor(rows, 8, row_cap)
    if row == 0:
        if rows <= row_cap:
            row = rows                 # small full-extent row block (legal, bounded)
        else:
            rows = -(-rows // 8) * 8   # pad rows up to a multiple of 8
            m_pad = rows * lane
            row = _largest_aligned_divisor(rows, 8, row_cap)
    return m_pad, lane, rows, row


def proj_pool(x, n=4):
    """W-ProjPooling: AvgPool2d(kernel=stride=int(sqrt(n))) over (B, C, H, W)."""
    k = int(math.sqrt(n))              # matches torch: silently floors non-squares
    kk = k * k
    B, C, H, W = x.shape
    Ho, Wo = H // k, W // k
    # AvgPool2d (no padding) drops trailing rows/cols that don't fill a window.
    x = x[:, :, : Ho * k, : Wo * k]

    out_dtype = x.dtype
    if not jnp.issubdtype(x.dtype, jnp.floating):
        x = x.astype(jnp.float32)      # torch AvgPool2d is float-only anyway

    M = B * C * Ho * Wo
    dsize = jnp.dtype(x.dtype).itemsize
    m_pad, lane, rows, row = _choose_tiling(M, kk, dsize)

    # Unfold pooling windows, OUTPUT-contiguous ordering:
    #   (B,C,Ho,k,Wo,k) -> (k,k,B,C,Ho,Wo) -> (k*k, B*C*Ho*Wo)
    xt = (
        x.reshape(B, C, Ho, k, Wo, k)
        .transpose(3, 5, 0, 1, 2, 4)
        .reshape(kk, M)
    )
    if m_pad != M:
        xt = jnp.pad(xt, ((0, 0), (0, m_pad - M)))
    xt = xt.reshape(kk, rows, lane)

    out2d = pl.pallas_call(
        _avgpool_kernel,
        out_shape=jax.ShapeDtypeStruct((rows, lane), x.dtype),
        grid_spec=pltpu.PrefetchScalarGridSpec(
            num_scalar_prefetch=0,
            grid=(rows // row,),
            in_specs=[pl.BlockSpec((kk, row, lane), lambda i: (0, i, 0))],
            out_specs=pl.BlockSpec((row, lane), lambda i: (i, 0)),
        ),
        compiler_params=pltpu.CompilerParams(
            dimension_semantics=("parallel",),
            vmem_limit_bytes=48 * 1024 * 1024,
        ),
        cost_estimate=pl.CostEstimate(
            flops=kk * m_pad,
            transcendentals=0,
            bytes_accessed=(kk + 1) * m_pad * dsize,
        ),
    )(xt)

    # Flat output is already in (B, C, Ho, Wo) order: free reshape, no transpose.
    out_flat = out2d.reshape(-1)
    if m_pad != M:
        out_flat = out_flat[:M]
    return out_flat.reshape(B, C, Ho, Wo).astype(out_dtype)


if __name__ == "__main__":
    key = jax.random.PRNGKey(0)
    B, C, H, W = 2, 4, 16, 16
    x = jax.random.normal(key, (B, C, H, W), dtype=jnp.float32)

    y = proj_pool(x, n=4)
    y = jax.block_until_ready(y)

    # Reference: 2x2 average pooling (AvgPool2d(2)).
    k = 2
    ref = x.reshape(B, C, H // k, k, W // k, k).mean(axis=(3, 5))

    assert y.shape == (B, C, H // k, W // k)
    assert jnp.max(jnp.abs(y - ref)) < 1e-5

    print("KERNEL_OK")
</pallas_src>

<mosaic_0001>
module attributes {stable_mosaic.version = 11 : i64} {
  func.func @_avgpool_kernel(%arg0: i32, %arg1: memref<4x1x512xf32, #tpu.memory_space<vmem>>, %arg2: memref<1x512xf32, #tpu.memory_space<vmem>>) attributes {dimension_semantics = [#tpu.dimension_semantics<parallel>], iteration_bounds = array<i64: 1>, scalar_prefetch = 0 : i64, scratch_operands = 0 : i64, tpu.core_type = #tpu.core_type<tc>, window_params = [{transform_indices = @transform_0, window_bounds = array<i64: 4, 1, 512>}, {transform_indices = @transform_1, window_bounds = array<i64: 1, 512>}]} {
    %c0 = arith.constant 0 : index
    %c0_0 = arith.constant 0 : index
    %c0_1 = arith.constant 0 : index
    %0 = vector.load %arg1[%c0, %c0_0, %c0_1] : memref<4x1x512xf32, #tpu.memory_space<vmem>>, vector<1x1x512xf32>
    %1 = vector.shape_cast %0 : vector<1x1x512xf32> to vector<1x512xf32>
    %c1 = arith.constant 1 : index
    %c0_2 = arith.constant 0 : index
    %c0_3 = arith.constant 0 : index
    %2 = vector.load %arg1[%c1, %c0_2, %c0_3] : memref<4x1x512xf32, #tpu.memory_space<vmem>>, vector<1x1x512xf32>
    %3 = vector.shape_cast %2 : vector<1x1x512xf32> to vector<1x512xf32>
    %4 = arith.addf %1, %3 : vector<1x512xf32>
    %c2 = arith.constant 2 : index
    %c0_4 = arith.constant 0 : index
    %c0_5 = arith.constant 0 : index
    %5 = vector.load %arg1[%c2, %c0_4, %c0_5] : memref<4x1x512xf32, #tpu.memory_space<vmem>>, vector<1x1x512xf32>
    %6 = vector.shape_cast %5 : vector<1x1x512xf32> to vector<1x512xf32>
    %7 = arith.addf %4, %6 : vector<1x512xf32>
    %c3 = arith.constant 3 : index
    %c0_6 = arith.constant 0 : index
    %c0_7 = arith.constant 0 : index
    %8 = vector.load %arg1[%c3, %c0_6, %c0_7] : memref<4x1x512xf32, #tpu.memory_space<vmem>>, vector<1x1x512xf32>
    %9 = vector.shape_cast %8 : vector<1x1x512xf32> to vector<1x512xf32>
    %10 = arith.addf %7, %9 : vector<1x512xf32>
    %cst = arith.constant 2.500000e-01 : f32
    %11 = vector.broadcast %cst : f32 to vector<1x512xf32>
    %12 = arith.mulf %10, %11 : vector<1x512xf32>
    %c0_8 = arith.constant 0 : index
    %c0_9 = arith.constant 0 : index
    %13 = vector.load %arg2[%c0_8, %c0_9] : memref<1x512xf32, #tpu.memory_space<vmem>>, vector<1x512xf32>
    tpu.vector_store %arg2[%c0_8, %c0_9], %12 {strides = array<i32>} : memref<1x512xf32, #tpu.memory_space<vmem>>, vector<1x512xf32>,
    return
  }
  func.func @transform_0(%arg0: i32) -> (i32, i32, i32) {
    %c0_i32 = arith.constant 0 : i32
    %c0_i32_0 = arith.constant 0 : i32
    %c0_i32_1 = arith.constant 0 : i32
    return %c0_i32, %arg0, %c0_i32_0 : i32, i32, i32
  }
  func.func @transform_1(%arg0: i32) -> (i32, i32) {
    %c0_i32 = arith.constant 0 : i32
    %c0_i32_0 = arith.constant 0 : i32
    return %arg0, %c0_i32 : i32, i32
  }
}

</mosaic_0001>

<llo_original>
// kernel: tpu_custom_call.1
$region0: #{tpu_custom_call.1}
  #allocation0 [shape = 'u32[]', space=smem, size = 0x4, offset = 0x4, fixed_abs, tag = 'smem constant byte address 0x4 - core index']
  #allocation1 [shape = 'u32[144,128]{1,0:T(1,128)}', space=vmem, size = 0x12000, scoped, tag = 'internal scratch']
  %s0 = inlined_call_operand.hbm [shape: f32[4,1,512], index: 0, kind: input, shape index: {}]
  %s1 = inlined_call_operand.hbm [shape: f32[1,512], index: 1, kind: output, shape index: {}]
  %s2 = sld [smem:[#allocation0]]
  $region18: #{tpu_custom_call.1} parent=0
    _
  %s4 = ssub.s32 1, %s2
  %s5 = scalar_select 0, %s4, %s2
  $region1: #{tpu_custom_call.1} parent=0
    #allocation2 [shape = 'u8[8192]{0}', space=vmem, size = 0x2000, scoped, tag = 'input window, operand 0, single buffered']
    #allocation3 [shape = 's32[1]{0}', space=sflag, size = 0x4, scoped, tag = 'scoped memory for tpu_custom_call.1']
    #allocation4 [shape = 's32[1]{0}', space=sflag, size = 0x4, scoped, tag = 'scoped memory for tpu_custom_call.1']
    #allocation5 [shape = 'u8[2048]{0}', space=vmem, size = 0x800, scoped, tag = 'output window, operand 0, single buffered']
    %6 = vsyncpa [#allocation3], 0
    %7 = vsyncpa [#allocation4], 0
    // Predicated region
    $region2: #{tpu_custom_call.1} parent=1 // pred_check
      _
    $region3: #{tpu_custom_call.1} parent=1 // pred_check_branch
      %9 = sbr.rel (0) target = $region5
    $region4: #{tpu_custom_call.1} parent=1 // pred_region
      %s11 = ssub.s32 256, 256
      %12 = vsyncadd [#allocation3], %s11
      %s13 = sshll.u32 [#allocation2], 4
      %s14 = int_to_ptr.vmem [resolvable:$true] %s13
      %19 = dma.hbm_to_vmem [thread:$0]  %s0, 256, %s14, [#allocation3], 64, 64, 4
    $region5: #{tpu_custom_call.1} parent=1 // pred_fallthru
      _
    // Predicated region
    $region6: #{tpu_custom_call.1} parent=1 // pred_check
      _
    $region7: #{tpu_custom_call.1} parent=1 // pred_check_branch
      %21 = sbr.rel (0) target = $region9
    $region8: #{tpu_custom_call.1} parent=1 // pred_region
      %22 = dma.done [#allocation3], 256
    $region9: #{tpu_custom_call.1} parent=1 // pred_fallthru
      _
    %v23 = vld [vmem:[#allocation2] sm:$0xf]
    %s24 = scalar_lea.vmem [#allocation2], 4
    %v25 = vld [vmem:[%s24] sm:$0xf]
    %v26 = vadd.f32 %v23, %v25
    %s27 = scalar_lea.vmem [#allocation2], 8
    %v28 = vld [vmem:[%s27] sm:$0xf]
    %v29 = vadd.f32 %v26, %v28
    %s30 = scalar_lea.vmem [#allocation2], 12
    %v31 = vld [vmem:[%s30] sm:$0xf]
    %v32 = vadd.f32 %v29, %v31
    %v33 = vmul.f32 %v32, 0.25
    %v34 = vlaneseq
    %vm35 = vcmp.ge.s32.totalorder %v34, 0
    %vm36 = vcmp.lt.s32.totalorder %v34, 512
    %vm37 = vmand %vm35, %vm36
    %38 = vst.msk [vmem:[#allocation5] sm:$0xf] %vm37, %v33
    // Predicated region
    $region10: #{tpu_custom_call.1} parent=1 // pred_check
      _
    $region11: #{tpu_custom_call.1} parent=1 // pred_check_branch
      %40 = sbr.rel (0) target = $region13
    $region12: #{tpu_custom_call.1} parent=1 // pred_region
      %s42 = ssub.s32 64, 64
      %43 = vsyncadd [#allocation4], %s42
      %s45 = sshll.u32 [#allocation5], 4
      %s46 = int_to_ptr.vmem [resolvable:$true] %s45
      %48 = dma.vmem_to_hbm [thread:$0]  %s46, 64, %s1, [#allocation4]
    $region13: #{tpu_custom_call.1} parent=1 // pred_fallthru
      _
    // Predicated region
    $region14: #{tpu_custom_call.1} parent=1 // pred_check
      _
    $region15: #{tpu_custom_call.1} parent=1 // pred_check_branch
      %50 = sbr.rel (0) target = $region17
    $region16: #{tpu_custom_call.1} parent=1 // pred_region
      %51 = dma.done [#allocation4], 64
    $region17: #{tpu_custom_call.1} parent=1 // pred_fallthru
      _
    %52 = vsyncpa [#allocation3], 1
    %53 = vsyncpa [#allocation4], 1

</llo_original>
